<compile_context>
chip_gen: v6e
topology: v6e:2x2x1
jax: 0.10.0
libtpu: 0.0.40
codegen_flags: <defaults>
</compile_context>

<pallas_src>
import functools

import jax
import jax.numpy as jnp
from jax.experimental import pallas as pl
from jax.experimental.pallas import tpu as pltpu


def _round_up(x: int, m: int) -> int:
    return ((x + m - 1) // m) * m


def _mlp_logsoftmax_kernel(x_ref, w1_ref, w2_ref, o_ref, *, num_valid_out: int):
    # Hidden layer: MXU matmul (f32 accumulate) + sigmoid (EUP/VPU).
    z1 = jnp.dot(x_ref[...], w1_ref[...], preferred_element_type=jnp.float32)
    z1 = jax.nn.sigmoid(z1)

    # Output layer logits over the lane-dense (padded) output width.
    logits = jnp.dot(z1.astype(w2_ref.dtype), w2_ref[...],
                     preferred_element_type=jnp.float32)

    o_pad = logits.shape[-1]
    if num_valid_out != o_pad:
        # Mask padded lanes to -inf so they contribute nothing to the softmax.
        lane = jax.lax.broadcasted_iota(jnp.int32, logits.shape, logits.ndim - 1)
        logits = jnp.where(lane < num_valid_out, logits, -jnp.inf)

    # Numerically stable log_softmax along dim=1 (last dim).
    m = jnp.max(logits, axis=-1, keepdims=True)
    shifted = logits - m
    lse = jnp.log(jnp.sum(jnp.exp(shifted), axis=-1, keepdims=True))
    o_ref[...] = (shifted - lse).astype(o_ref.dtype)


def neural_network_forward(x, w1, w2, *, block_batch: int = 512):
    """Forward pass: (B, I) @ (I, H) -> sigmoid -> @ (H, O) -> log_softmax(dim=1)."""
    batch, input_size = x.shape
    hidden_size, output_size = w2.shape
    assert w1.shape == (input_size, hidden_size)

    itemsize = jnp.dtype(x.dtype).itemsize

    # Lane-dense output width (multiple of 128). Pad w2's columns with zeros;
    # the kernel masks the padded logits to -inf before the softmax.
    o_pad = _round_up(max(output_size, 128), 128)
    w2p = jnp.pad(w2, ((0, 0), (0, o_pad - output_size))) if o_pad != output_size else w2

    # Batch tile: multiple of 8 sublanes, at most the (padded) batch.
    tb = min(block_batch, _round_up(batch, 8))
    tb = _round_up(tb, 8)
    b_pad = _round_up(batch, tb)
    xp = jnp.pad(x, ((0, b_pad - batch), (0, 0))) if b_pad != batch else x

    grid = (b_pad // tb,)

    # VMEM budget: double-buffered x/out tiles + resident weights (+ headroom).
    vmem_needed = (2 * (tb * input_size + tb * o_pad) * itemsize
                   + (input_size * hidden_size + hidden_size * o_pad) * itemsize)
    vmem_limit = min(max(4 * vmem_needed, 8 * 1024 * 1024), 32 * 1024 * 1024)

    cost = pl.CostEstimate(
        flops=2 * b_pad * input_size * hidden_size + 2 * b_pad * hidden_size * o_pad,
        transcendentals=b_pad * hidden_size + b_pad * o_pad + b_pad,
        bytes_accessed=(b_pad * input_size + input_size * hidden_size
                        + hidden_size * o_pad + b_pad * o_pad) * itemsize,
    )

    kernel = functools.partial(_mlp_logsoftmax_kernel, num_valid_out=output_size)

    out_padded = pl.pallas_call(
        kernel,
        out_shape=jax.ShapeDtypeStruct((b_pad, o_pad), x.dtype),
        grid_spec=pltpu.PrefetchScalarGridSpec(
            num_scalar_prefetch=0,
            grid=grid,
            in_specs=[
                # x: batch-tiled, pipelined across the grid.
                pl.BlockSpec((tb, input_size), lambda i: (i, 0)),
                # Weights: resident (same block every grid step).
                pl.BlockSpec((input_size, hidden_size), lambda i: (0, 0)),
                pl.BlockSpec((hidden_size, o_pad), lambda i: (0, 0)),
            ],
            out_specs=pl.BlockSpec((tb, o_pad), lambda i: (i, 0)),
        ),
        compiler_params=pltpu.CompilerParams(
            dimension_semantics=("parallel",),
            vmem_limit_bytes=int(vmem_limit),
        ),
        cost_estimate=cost,
    )(xp, w1, w2p)

    return out_padded[:batch, :output_size]


if __name__ == "__main__":
    # Small shapes consistent with the module's forward:
    # x: (batch, input_size); w1: (input_size, hidden_size); w2: (hidden_size, output_size)
    batch, input_size, hidden_size, output_size = 8, 32, 32, 16
    dtype = jnp.float32

    key = jax.random.PRNGKey(0)
    kx, k1, k2 = jax.random.split(key, 3)

    x = jax.random.normal(kx, (batch, input_size), dtype=dtype)
    # Deterministic init mirroring torch.randn(...) * 0.01
    w1 = jax.random.normal(k1, (input_size, hidden_size), dtype=dtype) * 0.01
    w2 = jax.random.normal(k2, (hidden_size, output_size), dtype=dtype) * 0.01

    out = neural_network_forward(x, w1, w2)
    out = jax.block_until_ready(out)

    # Reference check in plain JAX.
    z1_ref = jax.nn.sigmoid(x @ w1)
    ref = jax.nn.log_softmax(z1_ref @ w2, axis=1)
    assert out.shape == ref.shape, f"shape mismatch {out.shape} vs {ref.shape}"
    assert jnp.allclose(out, ref, atol=1e-5, rtol=1e-5), "mismatch vs reference"

    print("KERNEL_OK")
</pallas_src>

<mosaic_0001>
module attributes {stable_mosaic.version = 11 : i64} {
  func.func @_mlp_logsoftmax_kernel(%arg0: i32, %arg1: memref<8x32xf32, #tpu.memory_space<vmem>>, %arg2: memref<32x32xf32, #tpu.memory_space<vmem>>, %arg3: memref<32x128xf32, #tpu.memory_space<vmem>>, %arg4: memref<8x128xf32, #tpu.memory_space<vmem>>) attributes {dimension_semantics = [#tpu.dimension_semantics<parallel>], iteration_bounds = array<i64: 1>, scalar_prefetch = 0 : i64, scratch_operands = 0 : i64, tpu.core_type = #tpu.core_type<tc>, window_params = [{transform_indices = @transform_0, window_bounds = array<i64: 8, 32>}, {pipeline_mode = #tpu.pipeline_mode<synchronous>, transform_indices = @transform_1, window_bounds = array<i64: 32, 32>}, {pipeline_mode = #tpu.pipeline_mode<synchronous>, transform_indices = @transform_2, window_bounds = array<i64: 32, 128>}, {transform_indices = @transform_3, window_bounds = array<i64: 8, 128>}]} {
    %c0 = arith.constant 0 : index
    %c0_0 = arith.constant 0 : index
    %0 = vector.load %arg1[%c0, %c0_0] : memref<8x32xf32, #tpu.memory_space<vmem>>, vector<8x32xf32>
    %c0_1 = arith.constant 0 : index
    %c0_2 = arith.constant 0 : index
    %1 = vector.load %arg2[%c0_1, %c0_2] : memref<32x32xf32, #tpu.memory_space<vmem>>, vector<32x32xf32>
    %cst = arith.constant dense<0.000000e+00> : vector<8x32xf32>
    %2 = tpu.matmul %0, %1, %cst {dimension_numbers = #tpu.dot_dimension_numbers<[1], [0], [0], [1], [0, 0, 1, 1], [], []>} : vector<8x32xf32>, vector<32x32xf32>, vector<8x32xf32> -> vector<8x32xf32>
    %3 = arith.negf %2 : vector<8x32xf32>
    %4 = math.exp %3 : vector<8x32xf32>
    %cst_3 = arith.constant 1.000000e+00 : f32
    %5 = vector.broadcast %cst_3 : f32 to vector<8x32xf32>
    %6 = arith.addf %5, %4 : vector<8x32xf32>
    %7 = arith.divf %5, %6 : vector<8x32xf32>
    %c0_4 = arith.constant 0 : index
    %c0_5 = arith.constant 0 : index
    %8 = vector.load %arg3[%c0_4, %c0_5] : memref<32x128xf32, #tpu.memory_space<vmem>>, vector<32x128xf32>
    %cst_6 = arith.constant dense<0.000000e+00> : vector<8x128xf32>
    %9 = tpu.matmul %7, %8, %cst_6 {dimension_numbers = #tpu.dot_dimension_numbers<[1], [0], [0], [1], [0, 0, 1, 1], [], []>} : vector<8x32xf32>, vector<32x128xf32>, vector<8x128xf32> -> vector<8x128xf32>
    %10 = tpu.iota {dimensions = array<i32: 1>} : vector<8x128xi32>
    %c16_i32 = arith.constant 16 : i32
    %11 = vector.broadcast %c16_i32 : i32 to vector<8x128xi32>
    %12 = arith.cmpi slt, %10, %11 : vector<8x128xi32>
    %cst_7 = arith.constant 0xFF800000 : f32
    %13 = vector.broadcast %cst_7 : f32 to vector<8x128xf32>
    %14 = arith.select %12, %9, %13 : vector<8x128xi1>, vector<8x128xf32>
    %cst_8 = arith.constant dense<0xFF800000> : vector<8xf32>
    %15 = vector.multi_reduction <maximumf>, %14, %cst_8 [1] : vector<8x128xf32> to vector<8xf32>
    %16 = vector.shape_cast %15 : vector<8xf32> to vector<8x1xf32>
    %17 = vector.broadcast %16 : vector<8x1xf32> to vector<8x128xf32>
    %18 = arith.subf %14, %17 : vector<8x128xf32>
    %19 = math.exp %18 : vector<8x128xf32>
    %cst_9 = arith.constant dense<0.000000e+00> : vector<8xf32>
    %20 = vector.multi_reduction <add>, %19, %cst_9 [1] : vector<8x128xf32> to vector<8xf32>
    %21 = vector.shape_cast %20 : vector<8xf32> to vector<8x1xf32>
    %22 = math.log %21 : vector<8x1xf32>
    %23 = vector.broadcast %22 : vector<8x1xf32> to vector<8x128xf32>
    %24 = arith.subf %18, %23 : vector<8x128xf32>
    %c0_10 = arith.constant 0 : index
    %c0_11 = arith.constant 0 : index
    %25 = vector.load %arg4[%c0_10, %c0_11] : memref<8x128xf32, #tpu.memory_space<vmem>>, vector<8x128xf32>
    tpu.vector_store %arg4[%c0_10, %c0_11], %24 {strides = array<i32>} : memref<8x128xf32, #tpu.memory_space<vmem>>, vector<8x128xf32>,
    return
  }
  func.func @transform_0(%arg0: i32) -> (i32, i32) {
    %c0_i32 = arith.constant 0 : i32
    %c0_i32_0 = arith.constant 0 : i32
    return %arg0, %c0_i32 : i32, i32
  }
  func.func @transform_1(%arg0: i32) -> (i32, i32) {
    %c0_i32 = arith.constant 0 : i32
    %c0_i32_0 = arith.constant 0 : i32
    %c0_i32_1 = arith.constant 0 : i32
    return %c0_i32, %c0_i32_0 : i32, i32
  }
  func.func @transform_2(%arg0: i32) -> (i32, i32) {
    %c0_i32 = arith.constant 0 : i32
    %c0_i32_0 = arith.constant 0 : i32
    %c0_i32_1 = arith.constant 0 : i32
    return %c0_i32, %c0_i32_0 : i32, i32
  }
  func.func @transform_3(%arg0: i32) -> (i32, i32) {
    %c0_i32 = arith.constant 0 : i32
    %c0_i32_0 = arith.constant 0 : i32
    return %arg0, %c0_i32 : i32, i32
  }
}

</mosaic_0001>

<llo_original>
// kernel: tpu_custom_call.1
$region0: #{tpu_custom_call.1}
  #allocation0 [shape = 'u32[]', space=smem, size = 0x4, offset = 0x4, fixed_abs, tag = 'smem constant byte address 0x4 - core index']
  #allocation1 [shape = 'u32[144,128]{1,0:T(1,128)}', space=vmem, size = 0x12000, scoped, tag = 'internal scratch']
  %s0 = inlined_call_operand.hbm [shape: f32[8,32], index: 0, kind: input, shape index: {}]
  %s1 = inlined_call_operand.hbm [shape: f32[32,32], index: 1, kind: input, shape index: {}]
  %s2 = inlined_call_operand.hbm [shape: f32[32,128], index: 2, kind: input, shape index: {}]
  %s3 = inlined_call_operand.hbm [shape: f32[8,128], index: 3, kind: output, shape index: {}]
  %s4 = sld [smem:[#allocation0]]
  $region34: #{tpu_custom_call.1} parent=0
    _
  %s6 = ssub.s32 1, %s4
  %s7 = scalar_select 0, %s6, %s4
  $region1: #{tpu_custom_call.1} parent=0
    #allocation2 [shape = 'u8[4096]{0}', space=vmem, size = 0x1000, scoped, tag = 'input window, operand 0, single buffered']
    #allocation3 [shape = 's32[1]{0}', space=sflag, size = 0x4, scoped, tag = 'scoped memory for tpu_custom_call.1']
    #allocation4 [shape = 's32[1]{0}', space=sflag, size = 0x4, scoped, tag = 'scoped memory for tpu_custom_call.1']
    #allocation5 [shape = 'u8[16384]{0}', space=vmem, size = 0x4000, scoped, tag = 'input window, operand 1, single buffered']
    #allocation6 [shape = 's32[1]{0}', space=sflag, size = 0x4, scoped, tag = 'scoped memory for tpu_custom_call.1']
    #allocation7 [shape = 'u8[16384]{0}', space=vmem, size = 0x4000, scoped, tag = 'input window, operand 2, single buffered']
    #allocation8 [shape = 'u8[4096]{0}', space=vmem, size = 0x1000, scoped, tag = 'output window, operand 0, single buffered']
    %8 = vsyncpa [#allocation3], 0
    %9 = vsyncpa [#allocation6], 0
    %10 = vsyncpa [#allocation4], 0
    // Predicated region
    $region2: #{tpu_custom_call.1} parent=1 // pred_check
      _
    $region3: #{tpu_custom_call.1} parent=1 // pred_check_branch
      %12 = sbr.rel (0) target = $region5
    $region4: #{tpu_custom_call.1} parent=1 // pred_region
      %s14 = ssub.s32 128, 128
      %15 = vsyncadd [#allocation3], %s14
      %s17 = sshll.u32 [#allocation2], 4
      %s18 = int_to_ptr.vmem [resolvable:$true] %s17
      %20 = dma.hbm_to_vmem [thread:$0]  %s0, 128, %s18, [#allocation3]
    $region5: #{tpu_custom_call.1} parent=1 // pred_fallthru
      _
    // Predicated region
    $region6: #{tpu_custom_call.1} parent=1 // pred_check
      _
    $region7: #{tpu_custom_call.1} parent=1 // pred_check_branch
      %22 = sbr.rel (0) target = $region9
    $region8: #{tpu_custom_call.1} parent=1 // pred_region
      %s24 = ssub.s32 512, 512
      %25 = vsyncadd [#allocation6], %s24
      %s26 = sshll.u32 [#allocation5], 4
      %s27 = int_to_ptr.vmem [resolvable:$true] %s26
      %32 = dma.hbm_to_vmem [thread:$0]  %s1, 512, %s27, [#allocation6], 128, 128, 8
    $region9: #{tpu_custom_call.1} parent=1 // pred_fallthru
      _
    // Predicated region
    $region10: #{tpu_custom_call.1} parent=1 // pred_check
      _
    $region11: #{tpu_custom_call.1} parent=1 // pred_check_branch
      %34 = sbr.rel (0) target = $region13
    $region12: #{tpu_custom_call.1} parent=1 // pred_region
      %s36 = ssub.s32 512, 512
      %37 = vsyncadd [#allocation6], %s36
      %s38 = sshll.u32 [#allocation7], 4
      %s39 = int_to_ptr.vmem [resolvable:$true] %s38
      %44 = dma.hbm_to_vmem [thread:$0]  %s2, 512, %s39, [#allocation6], 128, 128, 8
    $region13: #{tpu_custom_call.1} parent=1 // pred_fallthru
      _
    // Predicated region
    $region14: #{tpu_custom_call.1} parent=1 // pred_check
      _
    $region15: #{tpu_custom_call.1} parent=1 // pred_check_branch
      %46 = sbr.rel (0) target = $region17
    $region16: #{tpu_custom_call.1} parent=1 // pred_region
      %47 = dma.done [#allocation3], 128
    $region17: #{tpu_custom_call.1} parent=1 // pred_fallthru
      _
    // Predicated region
    $region18: #{tpu_custom_call.1} parent=1 // pred_check
      _
    $region19: #{tpu_custom_call.1} parent=1 // pred_check_branch
      %49 = sbr.rel (0) target = $region21
    $region20: #{tpu_custom_call.1} parent=1 // pred_region
      %50 = dma.done [#allocation6], 512
    $region21: #{tpu_custom_call.1} parent=1 // pred_fallthru
      _
    // Predicated region
    $region22: #{tpu_custom_call.1} parent=1 // pred_check
      _
    $region23: #{tpu_custom_call.1} parent=1 // pred_check_branch
      %52 = sbr.rel (0) target = $region25
    $region24: #{tpu_custom_call.1} parent=1 // pred_region
      %53 = dma.done [#allocation6], 512
    $region25: #{tpu_custom_call.1} parent=1 // pred_fallthru
      _
    %v54 = vld [vmem:[#allocation2] sm:$0xff]
    %v55 = vld [vmem:[#allocation5] sm:$0xff]
    %v56 = vld [vmem:[#allocation5 + $0x8] sm:$0xff]
    %v57 = vld [vmem:[#allocation5 + $0x10] sm:$0xff]
    %v58 = vld [vmem:[#allocation5 + $0x18] sm:$0xff]
    %vm59 = vcmask 261120
    %v61 = vsel %vm59, %v54, 0
    %63 = vmatprep.subr.mxu0 0.0
    %64 = vmatpush1.msra.mxu0 0.0
    %65 = vmatprep.subr.mxu0 0.0
    %66 = vmatpush1.msra.mxu0 0.0
    %67 = vmatprep.subr.mxu0 0.0
    %68 = vmatpush1.msra.mxu0 0.0
    %69 = vmatprep.subr.mxu0 0.0
    %70 = vmatpush1.msra.mxu0 0.0
    %71 = vmatprep.subr.mxu0 0.0
    %72 = vmatpush1.msra.mxu0 0.0
    %73 = vmatprep.subr.mxu0 0.0
    %74 = vmatpush1.msra.mxu0 0.0
    %75 = vmatprep.subr.mxu0 0.0
    %76 = vmatpush1.msra.mxu0 0.0
    %77 = vmatprep.subr.mxu0 0.0
    %78 = vmatpush1.msra.mxu0 0.0
    %79 = vmatprep.subr.mxu0 0.0
    %80 = vmatpush1.msra.mxu0 0.0
    %81 = vmatprep.subr.mxu0 0.0
    %82 = vmatpush1.msra.mxu0 0.0
    %83 = vmatprep.subr.mxu0 0.0
    %84 = vmatpush1.msra.mxu0 0.0
    %85 = vmatprep.subr.mxu0 0.0
    %86 = vmatpush1.msra.mxu0 0.0
    %87 = vmatprep.subr.mxu0 0.0
    %88 = vmatpush1.msra.mxu0 %v58
    %89 = vmatprep.subr.mxu0 0.0
    %90 = vmatpush1.msra.mxu0 %v57
    %91 = vmatprep.subr.mxu0 0.0
    %92 = vmatpush1.msra.mxu0 %v56
    %93 = vmatprep.subr.mxu0 0.0
    %94 = vmatpush1.msra.mxu0 %v55
    %95 = vmatprep.subr.mxu0 0.0
    %96 = vmatpush2.msra.mxu0 0.0
    %97 = vmatprep.subr.mxu0 0.0
    %98 = vmatpush2.msra.mxu0 0.0
    %99 = vmatprep.subr.mxu0 0.0
    %100 = vmatpush2.msra.mxu0 0.0
    %101 = vmatprep.subr.mxu0 0.0
    %102 = vmatpush2.msra.mxu0 0.0
    %103 = vmatprep.subr.mxu0 0.0
    %104 = vmatpush2.msra.mxu0 0.0
    %105 = vmatprep.subr.mxu0 0.0
    %106 = vmatpush2.msra.mxu0 0.0
    %107 = vmatprep.subr.mxu0 0.0
    %108 = vmatpush2.msra.mxu0 0.0
    %109 = vmatprep.subr.mxu0 0.0
    %110 = vmatpush2.msra.mxu0 0.0
    %111 = vmatprep.subr.mxu0 0.0
    %112 = vmatpush2.msra.mxu0 0.0
    %113 = vmatprep.subr.mxu0 0.0
    %114 = vmatpush2.msra.mxu0 0.0
    %115 = vmatprep.subr.mxu0 0.0
    %116 = vmatpush2.msra.mxu0 0.0
    %117 = vmatprep.subr.mxu0 0.0
    %118 = vmatpush2.msra.mxu0 0.0
    %119 = vmatprep.subr.mxu0 0.0
    %120 = vmatpush2.msra.mxu0 0.0
    %121 = vmatprep.subr.mxu0 0.0
    %122 = vmatpush2.msra.mxu0 0.0
    %123 = vmatprep.subr.mxu0 0.0
    %124 = vmatpush2.msra.mxu0 0.0
    %125 = vmatprep.subr.mxu0 0.0
    %126 = vmatpush2.msra.mxu0 0.0
    %127 = vmatprep.mubr.f32.mxu0 0.0
    %128 = vmatmul.mubr.f32.gmra.mxu0 %v61
    %v129 = vpop.f32.mrf.mxu0
    %v130 = vadd.f32 0.0, %v129
    %v131 = vpop.f32.mrf.mxu0
    %132 = vdwg.mxu0
    %v133 = vxor.u32 %v130, 2147483648
    %v134 = vmul.f32 %v133, 1.442695
    %v135 = vpow.pop %v134
    %v136 = vadd.f32 %v135, 1.0
    %v137 = vrcp.pop %v136
    %v138 = vmul.f32 1.0, %v137
    %v139 = vld [vmem:[#allocation7] sm:$0xff]
    %v140 = vld [vmem:[#allocation7 + $0x8] sm:$0xff]
    %v141 = vld [vmem:[#allocation7 + $0x10] sm:$0xff]
    %v142 = vld [vmem:[#allocation7 + $0x18] sm:$0xff]
    %v144 = vsel %vm59, %v138, 0
    %146 = vmatprep.subr.mxu0 0.0
    %147 = vmatpush1.msra.mxu0 0.0
    %148 = vmatprep.subr.mxu0 0.0
    %149 = vmatpush1.msra.mxu0 0.0
    %150 = vmatprep.subr.mxu0 0.0
    %151 = vmatpush1.msra.mxu0 0.0
    %152 = vmatprep.subr.mxu0 0.0
    %153 = vmatpush1.msra.mxu0 0.0
    %154 = vmatprep.subr.mxu0 0.0
    %155 = vmatpush1.msra.mxu0 0.0
    %156 = vmatprep.subr.mxu0 0.0
    %157 = vmatpush1.msra.mxu0 0.0
    %158 = vmatprep.subr.mxu0 0.0
    %159 = vmatpush1.msra.mxu0 0.0
    %160 = vmatprep.subr.mxu0 0.0
    %161 = vmatpush1.msra.mxu0 0.0
    %162 = vmatprep.subr.mxu0 0.0
    %163 = vmatpush1.msra.mxu0 0.0
    %164 = vmatprep.subr.mxu0 0.0
    %165 = vmatpush1.msra.mxu0 0.0
    %166 = vmatprep.subr.mxu0 0.0
    %167 = vmatpush1.msra.mxu0 0.0
    %168 = vmatprep.subr.mxu0 0.0
    %169 = vmatpush1.msra.mxu0 0.0
    %170 = vmatprep.subr.mxu0 0.0
    %171 = vmatpush1.msra.mxu0 %v142
    %172 = vmatprep.subr.mxu0 0.0
    %173 = vmatpush1.msra.mxu0 %v141
    %174 = vmatprep.subr.mxu0 0.0
    %175 = vmatpush1.msra.mxu0 %v140
    %176 = vmatprep.subr.mxu0 0.0
    %177 = vmatpush1.msra.mxu0 %v139
    %178 = vmatprep.subr.mxu0 0.0
    %179 = vmatpush2.msra.mxu0 0.0
    %180 = vmatprep.subr.mxu0 0.0
    %181 = vmatpush2.msra.mxu0 0.0
    %182 = vmatprep.subr.mxu0 0.0
    %183 = vmatpush2.msra.mxu0 0.0
    %184 = vmatprep.subr.mxu0 0.0
    %185 = vmatpush2.msra.mxu0 0.0
    %186 = vmatprep.subr.mxu0 0.0
    %187 = vmatpush2.msra.mxu0 0.0
    %188 = vmatprep.subr.mxu0 0.0
    %189 = vmatpush2.msra.mxu0 0.0
    %190 = vmatprep.subr.mxu0 0.0
    %191 = vmatpush2.msra.mxu0 0.0
    %192 = vmatprep.subr.mxu0 0.0
    %193 = vmatpush2.msra.mxu0 0.0
    %194 = vmatprep.subr.mxu0 0.0
    %195 = vmatpush2.msra.mxu0 0.0
    %196 = vmatprep.subr.mxu0 0.0
    %197 = vmatpush2.msra.mxu0 0.0
    %198 = vmatprep.subr.mxu0 0.0
    %199 = vmatpush2.msra.mxu0 0.0
    %200 = vmatprep.subr.mxu0 0.0
    %201 = vmatpush2.msra.mxu0 0.0
    %202 = vmatprep.subr.mxu0 0.0
    %203 = vmatpush2.msra.mxu0 0.0
    %204 = vmatprep.subr.mxu0 0.0
    %205 = vmatpush2.msra.mxu0 0.0
    %206 = vmatprep.subr.mxu0 0.0
    %207 = vmatpush2.msra.mxu0 0.0
    %208 = vmatprep.subr.mxu0 0.0
    %209 = vmatpush2.msra.mxu0 0.0
    %210 = vmatprep.mubr.f32.mxu0 0.0
    %211 = vmatmul.mubr.f32.gmra.mxu0 %v144
    %v212 = vpop.f32.mrf.mxu0
    %v213 = vadd.f32 0.0, %v212
    %v214 = vpop.f32.mrf.mxu0
    %215 = vdwg.mxu0
    %v216 = vlaneseq
    %v217 = vand.u32 %v216, 127
    %vm218 = vcmp.lt.s32.totalorder %v217, 16
    %v219 = vsel %vm218, %v213, -inf
    %220 = vmax.xlane.f32.xlu0 %v219
    %v221 = vpop.xlane.xlu0 %220
    %v222 = vsub.f32 %v219, %v221
    %v223 = vmul.f32 %v222, 1.442695
    %v224 = vpow.pop %v223
    %225 = vadd.xlane.f32.xlu0 %v224
    %v226 = vpop.xlane.xlu0 %225
    %v227 = vlog2.pop %v226
    %v228 = vmul.f32 %v227, 0.6931472
    %v229 = vsub.f32 %v222, %v228
    %230 = vst [vmem:[#allocation8] sm:$0xff] %v229
    // Predicated region
    $region26: #{tpu_custom_call.1} parent=1 // pred_check
      _
    $region27: #{tpu_custom_call.1} parent=1 // pred_check_branch
      %232 = sbr.rel (0) target = $region29
    $region28: #{tpu_custom_call.1} parent=1 // pred_region
      %s234 = ssub.s32 128, 128
      %235 = vsyncadd [#allocation4], %s234
      %s237 = sshll.u32 [#allocation8], 4
      %s238 = int_to_ptr.vmem [resolvable:$true] %s237
      %240 = dma.vmem_to_hbm [thread:$0]  %s238, 128, %s3, [#allocation4]
    $region29: #{tpu_custom_call.1} parent=1 // pred_fallthru
      _
    // Predicated region
    $region30: #{tpu_custom_call.1} parent=1 // pred_check
      _
    $region31: #{tpu_custom_call.1} parent=1 // pred_check_branch
      %242 = sbr.rel (0) target = $region33
    $region32: #{tpu_custom_call.1} parent=1 // pred_region
      %243 = dma.done [#allocation4], 128
    $region33: #{tpu_custom_call.1} parent=1 // pred_fallthru
      _
    %244 = vsyncpa [#allocation3], 1
    %245 = vsyncpa [#allocation6], 1
    %246 = vsyncpa [#allocation4], 1

</llo_original>
